<compile_context>
chip_gen: v6e
topology: v6e:2x2x1
jax: 0.10.0
libtpu: 0.0.40
codegen_flags: <defaults>
</compile_context>

<pallas_src>
import jax
import jax.numpy as jnp
import numpy as np
from jax.experimental import pallas as pl


def _lstm_fused_kernel(x_ref, w_ih_ref, w_hh_ref, bias_ref,
                       h0_ref, c0_ref, out_ref):
    """Fused input projection + serial LSTM recurrence (layer 0, forward).

    x_ref   : (B*L, V)  flattened batch-first input (row index = b*L + t)
    w_ih_ref: (V, 4H)   input weight W_ih^T, PyTorch gate order [i, f, g, o]
    w_hh_ref: (H, 4H)   recurrent weight W_hh^T, same gate order
    bias_ref: (1, 4H)   b_ih + b_hh
    h0_ref  : (B, H)    initial hidden state
    c0_ref  : (B, H)    initial cell state
    out_ref : (B, H)    hidden state after the last step (== PyTorch h_s[0])
    """
    BL, _ = x_ref.shape
    B, H = h0_ref.shape
    L = BL // B

    # --- Fused input projection: ONE MXU matmul for every (b, t) row.  No
    # serial dependence, so it is off the recurrence critical path; the bias
    # broadcast-add is hoisted out of the loop as well.
    xg_all = (jnp.dot(x_ref[...], w_ih_ref[...],
                      preferred_element_type=jnp.float32)
              + bias_ref[...])                       # (B*L, 4H), f32
    xg = xg_all.reshape(B, L, 4 * H)                 # sublane-major split

    # Loop-invariant recurrent weight: bf16 MXU operand (f32 accumulation).
    w_hh = w_hh_ref[...].astype(jnp.bfloat16)

    h = h0_ref[...]                                  # f32 carries
    c = c0_ref[...]

    # L is small and static -> fully unrolled; h/c carried as values (vregs),
    # exactly one MXU matmul per step on the serial critical chain.
    for t in range(L):
        gates = xg[:, t, :] + jnp.dot(h.astype(jnp.bfloat16), w_hh,
                                      preferred_element_type=jnp.float32)
        # 4H = 128 lanes = one vreg: a single sigmoid and a single tanh EUP
        # launch cover all four gates (PyTorch order [i | f | g | o]).
        sig = jax.nn.sigmoid(gates)
        tng = jnp.tanh(gates)
        i_g = sig[:, 0 * H:1 * H]
        f_g = sig[:, 1 * H:2 * H]
        g_g = tng[:, 2 * H:3 * H]
        o_g = sig[:, 3 * H:4 * H]
        c = f_g * c + i_g * g_g
        h = o_g * jnp.tanh(c)

    out_ref[...] = h.astype(out_ref.dtype)


def lstm_forward(x, w_ih_t, w_hh_t, bias, h0, c0):
    """x: (B, L, V); weights pre-transposed W_ih^T (V,4H), W_hh^T (H,4H),
    bias (1,4H), PyTorch gate order [i, f, g, o].
    Returns h_s[0]: (B, H), float32."""
    B, L, V = x.shape
    H = h0.shape[-1]

    # Free (contiguous) reshape; all real work happens inside the kernel.
    x2d = x.astype(jnp.float32).reshape(B * L, V)

    # Single gridless invocation: all operands live in VMEM as whole-array
    # blocks, the serial recurrence runs fully inside one pallas_call with
    # no per-step pipeline overhead and no extra XLA ops around it.
    return pl.pallas_call(
        _lstm_fused_kernel,
        out_shape=jax.ShapeDtypeStruct((B, H), jnp.float32),
    )(x2d, w_ih_t, w_hh_t, bias, h0, c0)


def _reference_lstm(x, w_ih_t, w_hh_t, bias, h0, c0):
    """Pure-JAX f32 reference of the layer-0 forward recurrence
    (PyTorch [i, f, g, o] gate order)."""
    H = h0.shape[-1]

    def step(carry, x_t):
        h, c = carry
        gates = x_t @ w_ih_t + h @ w_hh_t + bias
        i_g = jax.nn.sigmoid(gates[:, 0 * H:1 * H])
        f_g = jax.nn.sigmoid(gates[:, 1 * H:2 * H])
        g_g = jnp.tanh(gates[:, 2 * H:3 * H])
        o_g = jax.nn.sigmoid(gates[:, 3 * H:4 * H])
        c = f_g * c + i_g * g_g
        h = o_g * jnp.tanh(c)
        return (h, c), None

    (h, _), _ = jax.lax.scan(step, (h0, c0), jnp.transpose(x, (1, 0, 2)))
    return h


if __name__ == "__main__":
    # Small shapes implied by the module: batch B, seq length L,
    # vector_size V, d_model H.
    B, L, V, H = 2, 8, 16, 32

    key = jax.random.PRNGKey(0)
    kx, kw1, kw2, kb1, kb2, kh, kc = jax.random.split(key, 7)

    # PyTorch nn.LSTM init: U(-1/sqrt(H), 1/sqrt(H)) for all params.
    bound = 1.0 / np.sqrt(H)
    x = jax.random.normal(kx, (B, L, V), dtype=jnp.float32)
    w_ih_t = jax.random.uniform(kw1, (V, 4 * H), jnp.float32, -bound, bound)
    w_hh_t = jax.random.uniform(kw2, (H, 4 * H), jnp.float32, -bound, bound)
    b_ih = jax.random.uniform(kb1, (1, 4 * H), jnp.float32, -bound, bound)
    b_hh = jax.random.uniform(kb2, (1, 4 * H), jnp.float32, -bound, bound)
    bias = b_ih + b_hh

    # init_hidden() uses torch.randn — reproduced here deterministically.
    h0 = jax.random.normal(kh, (B, H), dtype=jnp.float32)
    c0 = jax.random.normal(kc, (B, H), dtype=jnp.float32)

    lstm_fn = jax.jit(lstm_forward)           # single dispatch on the host path
    out = lstm_fn(x, w_ih_t, w_hh_t, bias, h0, c0)
    out = jax.block_until_ready(out)

    # Tolerance loosened vs. the pure-f32 version because the recurrent
    # matmul feeds the MXU bf16 operands (f32 accumulation); elementwise
    # gate math and the h/c carries remain f32.
    ref = _reference_lstm(x, w_ih_t, w_hh_t, bias, h0, c0)
    np.testing.assert_allclose(np.asarray(out), np.asarray(ref),
                               rtol=3e-2, atol=3e-2)
    print("KERNEL_OK")
</pallas_src>

<mosaic_0001>
module attributes {stable_mosaic.version = 11 : i64} {
  func.func @_lstm_fused_kernel(%arg0: memref<16x16xf32, #tpu.memory_space<vmem>>, %arg1: memref<16x128xf32, #tpu.memory_space<vmem>>, %arg2: memref<32x128xf32, #tpu.memory_space<vmem>>, %arg3: memref<1x128xf32, #tpu.memory_space<vmem>>, %arg4: memref<2x32xf32, #tpu.memory_space<vmem>>, %arg5: memref<2x32xf32, #tpu.memory_space<vmem>>, %arg6: memref<2x32xf32, #tpu.memory_space<vmem>>) attributes {dimension_semantics = [], scalar_prefetch = 0 : i64, scratch_operands = 0 : i64, tpu.core_type = #tpu.core_type<tc>} {
    %c0 = arith.constant 0 : index
    %c0_0 = arith.constant 0 : index
    %0 = vector.load %arg0[%c0, %c0_0] : memref<16x16xf32, #tpu.memory_space<vmem>>, vector<16x16xf32>
    %c0_1 = arith.constant 0 : index
    %c0_2 = arith.constant 0 : index
    %1 = vector.load %arg1[%c0_1, %c0_2] : memref<16x128xf32, #tpu.memory_space<vmem>>, vector<16x128xf32>
    %cst = arith.constant dense<0.000000e+00> : vector<16x128xf32>
    %2 = tpu.matmul %0, %1, %cst {dimension_numbers = #tpu.dot_dimension_numbers<[1], [0], [0], [1], [0, 0, 1, 1], [], []>} : vector<16x16xf32>, vector<16x128xf32>, vector<16x128xf32> -> vector<16x128xf32>
    %c0_3 = arith.constant 0 : index
    %c0_4 = arith.constant 0 : index
    %3 = vector.load %arg3[%c0_3, %c0_4] : memref<1x128xf32, #tpu.memory_space<vmem>>, vector<1x128xf32>
    %4 = vector.broadcast %3 : vector<1x128xf32> to vector<16x128xf32>
    %5 = arith.addf %2, %4 : vector<16x128xf32>
    %6 = vector.shape_cast %5 : vector<16x128xf32> to vector<2x8x128xf32>
    %c0_5 = arith.constant 0 : index
    %c0_6 = arith.constant 0 : index
    %7 = vector.load %arg2[%c0_5, %c0_6] : memref<32x128xf32, #tpu.memory_space<vmem>>, vector<32x128xf32>
    %8 = arith.truncf %7 : vector<32x128xf32> to vector<32x128xbf16>
    %c0_7 = arith.constant 0 : index
    %c0_8 = arith.constant 0 : index
    %9 = vector.load %arg4[%c0_7, %c0_8] : memref<2x32xf32, #tpu.memory_space<vmem>>, vector<2x32xf32>
    %c0_9 = arith.constant 0 : index
    %c0_10 = arith.constant 0 : index
    %10 = vector.load %arg5[%c0_9, %c0_10] : memref<2x32xf32, #tpu.memory_space<vmem>>, vector<2x32xf32>
    %11 = vector.extract_strided_slice %6 {offsets = [0, 0, 0], sizes = [2, 1, 128], strides = [1, 1, 1]} : vector<2x8x128xf32> to vector<2x1x128xf32>
    %12 = vector.shape_cast %11 : vector<2x1x128xf32> to vector<2x128xf32>
    %13 = arith.truncf %9 : vector<2x32xf32> to vector<2x32xbf16>
    %cst_11 = arith.constant dense<0.000000e+00> : vector<2x128xf32>
    %14 = tpu.matmul %13, %8, %cst_11 {dimension_numbers = #tpu.dot_dimension_numbers<[1], [0], [0], [1], [0, 0, 1, 1], [], []>} : vector<2x32xbf16>, vector<32x128xbf16>, vector<2x128xf32> -> vector<2x128xf32>
    %15 = arith.addf %12, %14 : vector<2x128xf32>
    %16 = arith.negf %15 : vector<2x128xf32>
    %17 = math.exp %16 : vector<2x128xf32>
    %cst_12 = arith.constant 1.000000e+00 : f32
    %18 = vector.broadcast %cst_12 : f32 to vector<2x128xf32>
    %19 = arith.addf %18, %17 : vector<2x128xf32>
    %20 = arith.divf %18, %19 : vector<2x128xf32>
    %21 = math.tanh %15 : vector<2x128xf32>
    %22 = vector.extract_strided_slice %20 {offsets = [0, 0], sizes = [2, 32], strides = [1, 1]} : vector<2x128xf32> to vector<2x32xf32>
    %23 = vector.extract_strided_slice %20 {offsets = [0, 32], sizes = [2, 32], strides = [1, 1]} : vector<2x128xf32> to vector<2x32xf32>
    %24 = vector.extract_strided_slice %21 {offsets = [0, 64], sizes = [2, 32], strides = [1, 1]} : vector<2x128xf32> to vector<2x32xf32>
    %25 = vector.extract_strided_slice %20 {offsets = [0, 96], sizes = [2, 32], strides = [1, 1]} : vector<2x128xf32> to vector<2x32xf32>
    %26 = arith.mulf %23, %10 : vector<2x32xf32>
    %27 = arith.mulf %22, %24 : vector<2x32xf32>
    %28 = arith.addf %26, %27 : vector<2x32xf32>
    %29 = math.tanh %28 : vector<2x32xf32>
    %30 = arith.mulf %25, %29 : vector<2x32xf32>
    %31 = vector.extract_strided_slice %6 {offsets = [0, 1, 0], sizes = [2, 1, 128], strides = [1, 1, 1]} : vector<2x8x128xf32> to vector<2x1x128xf32>
    %32 = vector.shape_cast %31 : vector<2x1x128xf32> to vector<2x128xf32>
    %33 = arith.truncf %30 : vector<2x32xf32> to vector<2x32xbf16>
    %cst_13 = arith.constant dense<0.000000e+00> : vector<2x128xf32>
    %34 = tpu.matmul %33, %8, %cst_13 {dimension_numbers = #tpu.dot_dimension_numbers<[1], [0], [0], [1], [0, 0, 1, 1], [], []>} : vector<2x32xbf16>, vector<32x128xbf16>, vector<2x128xf32> -> vector<2x128xf32>
    %35 = arith.addf %32, %34 : vector<2x128xf32>
    %36 = arith.negf %35 : vector<2x128xf32>
    %37 = math.exp %36 : vector<2x128xf32>
    %cst_14 = arith.constant 1.000000e+00 : f32
    %38 = vector.broadcast %cst_14 : f32 to vector<2x128xf32>
    %39 = arith.addf %38, %37 : vector<2x128xf32>
    %40 = arith.divf %38, %39 : vector<2x128xf32>
    %41 = math.tanh %35 : vector<2x128xf32>
    %42 = vector.extract_strided_slice %40 {offsets = [0, 0], sizes = [2, 32], strides = [1, 1]} : vector<2x128xf32> to vector<2x32xf32>
    %43 = vector.extract_strided_slice %40 {offsets = [0, 32], sizes = [2, 32], strides = [1, 1]} : vector<2x128xf32> to vector<2x32xf32>
    %44 = vector.extract_strided_slice %41 {offsets = [0, 64], sizes = [2, 32], strides = [1, 1]} : vector<2x128xf32> to vector<2x32xf32>
    %45 = vector.extract_strided_slice %40 {offsets = [0, 96], sizes = [2, 32], strides = [1, 1]} : vector<2x128xf32> to vector<2x32xf32>
    %46 = arith.mulf %43, %28 : vector<2x32xf32>
    %47 = arith.mulf %42, %44 : vector<2x32xf32>
    %48 = arith.addf %46, %47 : vector<2x32xf32>
    %49 = math.tanh %48 : vector<2x32xf32>
    %50 = arith.mulf %45, %49 : vector<2x32xf32>
    %51 = vector.extract_strided_slice %6 {offsets = [0, 2, 0], sizes = [2, 1, 128], strides = [1, 1, 1]} : vector<2x8x128xf32> to vector<2x1x128xf32>
    %52 = vector.shape_cast %51 : vector<2x1x128xf32> to vector<2x128xf32>
    %53 = arith.truncf %50 : vector<2x32xf32> to vector<2x32xbf16>
    %cst_15 = arith.constant dense<0.000000e+00> : vector<2x128xf32>
    %54 = tpu.matmul %53, %8, %cst_15 {dimension_numbers = #tpu.dot_dimension_numbers<[1], [0], [0], [1], [0, 0, 1, 1], [], []>} : vector<2x32xbf16>, vector<32x128xbf16>, vector<2x128xf32> -> vector<2x128xf32>
    %55 = arith.addf %52, %54 : vector<2x128xf32>
    %56 = arith.negf %55 : vector<2x128xf32>
    %57 = math.exp %56 : vector<2x128xf32>
    %cst_16 = arith.constant 1.000000e+00 : f32
    %58 = vector.broadcast %cst_16 : f32 to vector<2x128xf32>
    %59 = arith.addf %58, %57 : vector<2x128xf32>
    %60 = arith.divf %58, %59 : vector<2x128xf32>
    %61 = math.tanh %55 : vector<2x128xf32>
    %62 = vector.extract_strided_slice %60 {offsets = [0, 0], sizes = [2, 32], strides = [1, 1]} : vector<2x128xf32> to vector<2x32xf32>
    %63 = vector.extract_strided_slice %60 {offsets = [0, 32], sizes = [2, 32], strides = [1, 1]} : vector<2x128xf32> to vector<2x32xf32>
    %64 = vector.extract_strided_slice %61 {offsets = [0, 64], sizes = [2, 32], strides = [1, 1]} : vector<2x128xf32> to vector<2x32xf32>
    %65 = vector.extract_strided_slice %60 {offsets = [0, 96], sizes = [2, 32], strides = [1, 1]} : vector<2x128xf32> to vector<2x32xf32>
    %66 = arith.mulf %63, %48 : vector<2x32xf32>
    %67 = arith.mulf %62, %64 : vector<2x32xf32>
    %68 = arith.addf %66, %67 : vector<2x32xf32>
    %69 = math.tanh %68 : vector<2x32xf32>
    %70 = arith.mulf %65, %69 : vector<2x32xf32>
    %71 = vector.extract_strided_slice %6 {offsets = [0, 3, 0], sizes = [2, 1, 128], strides = [1, 1, 1]} : vector<2x8x128xf32> to vector<2x1x128xf32>
    %72 = vector.shape_cast %71 : vector<2x1x128xf32> to vector<2x128xf32>
    %73 = arith.truncf %70 : vector<2x32xf32> to vector<2x32xbf16>
    %cst_17 = arith.constant dense<0.000000e+00> : vector<2x128xf32>
    %74 = tpu.matmul %73, %8, %cst_17 {dimension_numbers = #tpu.dot_dimension_numbers<[1], [0], [0], [1], [0, 0, 1, 1], [], []>} : vector<2x32xbf16>, vector<32x128xbf16>, vector<2x128xf32> -> vector<2x128xf32>
    %75 = arith.addf %72, %74 : vector<2x128xf32>
    %76 = arith.negf %75 : vector<2x128xf32>
    %77 = math.exp %76 : vector<2x128xf32>
    %cst_18 = arith.constant 1.000000e+00 : f32
    %78 = vector.broadcast %cst_18 : f32 to vector<2x128xf32>
    %79 = arith.addf %78, %77 : vector<2x128xf32>
    %80 = arith.divf %78, %79 : vector<2x128xf32>
    %81 = math.tanh %75 : vector<2x128xf32>
    %82 = vector.extract_strided_slice %80 {offsets = [0, 0], sizes = [2, 32], strides = [1, 1]} : vector<2x128xf32> to vector<2x32xf32>
    %83 = vector.extract_strided_slice %80 {offsets = [0, 32], sizes = [2, 32], strides = [1, 1]} : vector<2x128xf32> to vector<2x32xf32>
    %84 = vector.extract_strided_slice %81 {offsets = [0, 64], sizes = [2, 32], strides = [1, 1]} : vector<2x128xf32> to vector<2x32xf32>
    %85 = vector.extract_strided_slice %80 {offsets = [0, 96], sizes = [2, 32], strides = [1, 1]} : vector<2x128xf32> to vector<2x32xf32>
    %86 = arith.mulf %83, %68 : vector<2x32xf32>
    %87 = arith.mulf %82, %84 : vector<2x32xf32>
    %88 = arith.addf %86, %87 : vector<2x32xf32>
    %89 = math.tanh %88 : vector<2x32xf32>
    %90 = arith.mulf %85, %89 : vector<2x32xf32>
    %91 = vector.extract_strided_slice %6 {offsets = [0, 4, 0], sizes = [2, 1, 128], strides = [1, 1, 1]} : vector<2x8x128xf32> to vector<2x1x128xf32>
    %92 = vector.shape_cast %91 : vector<2x1x128xf32> to vector<2x128xf32>
    %93 = arith.truncf %90 : vector<2x32xf32> to vector<2x32xbf16>
    %cst_19 = arith.constant dense<0.000000e+00> : vector<2x128xf32>
    %94 = tpu.matmul %93, %8, %cst_19 {dimension_numbers = #tpu.dot_dimension_numbers<[1], [0], [0], [1], [0, 0, 1, 1], [], []>} : vector<2x32xbf16>, vector<32x128xbf16>, vector<2x128xf32> -> vector<2x128xf32>
    %95 = arith.addf %92, %94 : vector<2x128xf32>
    %96 = arith.negf %95 : vector<2x128xf32>
    %97 = math.exp %96 : vector<2x128xf32>
    %cst_20 = arith.constant 1.000000e+00 : f32
    %98 = vector.broadcast %cst_20 : f32 to vector<2x128xf32>
    %99 = arith.addf %98, %97 : vector<2x128xf32>
    %100 = arith.divf %98, %99 : vector<2x128xf32>
    %101 = math.tanh %95 : vector<2x128xf32>
    %102 = vector.extract_strided_slice %100 {offsets = [0, 0], sizes = [2, 32], strides = [1, 1]} : vector<2x128xf32> to vector<2x32xf32>
    %103 = vector.extract_strided_slice %100 {offsets = [0, 32], sizes = [2, 32], strides = [1, 1]} : vector<2x128xf32> to vector<2x32xf32>
    %104 = vector.extract_strided_slice %101 {offsets = [0, 64], sizes = [2, 32], strides = [1, 1]} : vector<2x128xf32> to vector<2x32xf32>
    %105 = vector.extract_strided_slice %100 {offsets = [0, 96], sizes = [2, 32], strides = [1, 1]} : vector<2x128xf32> to vector<2x32xf32>
    %106 = arith.mulf %103, %88 : vector<2x32xf32>
    %107 = arith.mulf %102, %104 : vector<2x32xf32>
    %108 = arith.addf %106, %107 : vector<2x32xf32>
    %109 = math.tanh %108 : vector<2x32xf32>
    %110 = arith.mulf %105, %109 : vector<2x32xf32>
    %111 = vector.extract_strided_slice %6 {offsets = [0, 5, 0], sizes = [2, 1, 128], strides = [1, 1, 1]} : vector<2x8x128xf32> to vector<2x1x128xf32>
    %112 = vector.shape_cast %111 : vector<2x1x128xf32> to vector<2x128xf32>
    %113 = arith.truncf %110 : vector<2x32xf32> to vector<2x32xbf16>
    %cst_21 = arith.constant dense<0.000000e+00> : vector<2x128xf32>
    %114 = tpu.matmul %113, %8, %cst_21 {dimension_numbers = #tpu.dot_dimension_numbers<[1], [0], [0], [1], [0, 0, 1, 1], [], []>} : vector<2x32xbf16>, vector<32x128xbf16>, vector<2x128xf32> -> vector<2x128xf32>
    %115 = arith.addf %112, %114 : vector<2x128xf32>
    %116 = arith.negf %115 : vector<2x128xf32>
    %117 = math.exp %116 : vector<2x128xf32>
    %cst_22 = arith.constant 1.000000e+00 : f32
    %118 = vector.broadcast %cst_22 : f32 to vector<2x128xf32>
    %119 = arith.addf %118, %117 : vector<2x128xf32>
    %120 = arith.divf %118, %119 : vector<2x128xf32>
    %121 = math.tanh %115 : vector<2x128xf32>
    %122 = vector.extract_strided_slice %120 {offsets = [0, 0], sizes = [2, 32], strides = [1, 1]} : vector<2x128xf32> to vector<2x32xf32>
    %123 = vector.extract_strided_slice %120 {offsets = [0, 32], sizes = [2, 32], strides = [1, 1]} : vector<2x128xf32> to vector<2x32xf32>
    %124 = vector.extract_strided_slice %121 {offsets = [0, 64], sizes = [2, 32], strides = [1, 1]} : vector<2x128xf32> to vector<2x32xf32>
    %125 = vector.extract_strided_slice %120 {offsets = [0, 96], sizes = [2, 32], strides = [1, 1]} : vector<2x128xf32> to vector<2x32xf32>
    %126 = arith.mulf %123, %108 : vector<2x32xf32>
    %127 = arith.mulf %122, %124 : vector<2x32xf32>
    %128 = arith.addf %126, %127 : vector<2x32xf32>
    %129 = math.tanh %128 : vector<2x32xf32>
    %130 = arith.mulf %125, %129 : vector<2x32xf32>
    %131 = vector.extract_strided_slice %6 {offsets = [0, 6, 0], sizes = [2, 1, 128], strides = [1, 1, 1]} : vector<2x8x128xf32> to vector<2x1x128xf32>
    %132 = vector.shape_cast %131 : vector<2x1x128xf32> to vector<2x128xf32>
    %133 = arith.truncf %130 : vector<2x32xf32> to vector<2x32xbf16>
    %cst_23 = arith.constant dense<0.000000e+00> : vector<2x128xf32>
    %134 = tpu.matmul %133, %8, %cst_23 {dimension_numbers = #tpu.dot_dimension_numbers<[1], [0], [0], [1], [0, 0, 1, 1], [], []>} : vector<2x32xbf16>, vector<32x128xbf16>, vector<2x128xf32> -> vector<2x128xf32>
    %135 = arith.addf %132, %134 : vector<2x128xf32>
    %136 = arith.negf %135 : vector<2x128xf32>
    %137 = math.exp %136 : vector<2x128xf32>
    %cst_24 = arith.constant 1.000000e+00 : f32
    %138 = vector.broadcast %cst_24 : f32 to vector<2x128xf32>
    %139 = arith.addf %138, %137 : vector<2x128xf32>
    %140 = arith.divf %138, %139 : vector<2x128xf32>
    %141 = math.tanh %135 : vector<2x128xf32>
    %142 = vector.extract_strided_slice %140 {offsets = [0, 0], sizes = [2, 32], strides = [1, 1]} : vector<2x128xf32> to vector<2x32xf32>
    %143 = vector.extract_strided_slice %140 {offsets = [0, 32], sizes = [2, 32], strides = [1, 1]} : vector<2x128xf32> to vector<2x32xf32>
    %144 = vector.extract_strided_slice %141 {offsets = [0, 64], sizes = [2, 32], strides = [1, 1]} : vector<2x128xf32> to vector<2x32xf32>
    %145 = vector.extract_strided_slice %140 {offsets = [0, 96], sizes = [2, 32], strides = [1, 1]} : vector<2x128xf32> to vector<2x32xf32>
    %146 = arith.mulf %143, %128 : vector<2x32xf32>
    %147 = arith.mulf %142, %144 : vector<2x32xf32>
    %148 = arith.addf %146, %147 : vector<2x32xf32>
    %149 = math.tanh %148 : vector<2x32xf32>
    %150 = arith.mulf %145, %149 : vector<2x32xf32>
    %151 = vector.extract_strided_slice %6 {offsets = [0, 7, 0], sizes = [2, 1, 128], strides = [1, 1, 1]} : vector<2x8x128xf32> to vector<2x1x128xf32>
    %152 = vector.shape_cast %151 : vector<2x1x128xf32> to vector<2x128xf32>
    %153 = arith.truncf %150 : vector<2x32xf32> to vector<2x32xbf16>
    %cst_25 = arith.constant dense<0.000000e+00> : vector<2x128xf32>
    %154 = tpu.matmul %153, %8, %cst_25 {dimension_numbers = #tpu.dot_dimension_numbers<[1], [0], [0], [1], [0, 0, 1, 1], [], []>} : vector<2x32xbf16>, vector<32x128xbf16>, vector<2x128xf32> -> vector<2x128xf32>
    %155 = arith.addf %152, %154 : vector<2x128xf32>
    %156 = arith.negf %155 : vector<2x128xf32>
    %157 = math.exp %156 : vector<2x128xf32>
    %cst_26 = arith.constant 1.000000e+00 : f32
    %158 = vector.broadcast %cst_26 : f32 to vector<2x128xf32>
    %159 = arith.addf %158, %157 : vector<2x128xf32>
    %160 = arith.divf %158, %159 : vector<2x128xf32>
    %161 = math.tanh %155 : vector<2x128xf32>
    %162 = vector.extract_strided_slice %160 {offsets = [0, 0], sizes = [2, 32], strides = [1, 1]} : vector<2x128xf32> to vector<2x32xf32>
    %163 = vector.extract_strided_slice %160 {offsets = [0, 32], sizes = [2, 32], strides = [1, 1]} : vector<2x128xf32> to vector<2x32xf32>
    %164 = vector.extract_strided_slice %161 {offsets = [0, 64], sizes = [2, 32], strides = [1, 1]} : vector<2x128xf32> to vector<2x32xf32>
    %165 = vector.extract_strided_slice %160 {offsets = [0, 96], sizes = [2, 32], strides = [1, 1]} : vector<2x128xf32> to vector<2x32xf32>
    %166 = arith.mulf %163, %148 : vector<2x32xf32>
    %167 = arith.mulf %162, %164 : vector<2x32xf32>
    %168 = arith.addf %166, %167 : vector<2x32xf32>
    %169 = math.tanh %168 : vector<2x32xf32>
    %170 = arith.mulf %165, %169 : vector<2x32xf32>
    %c0_27 = arith.constant 0 : index
    %c0_28 = arith.constant 0 : index
    %171 = vector.load %arg6[%c0_27, %c0_28] : memref<2x32xf32, #tpu.memory_space<vmem>>, vector<2x32xf32>
    tpu.vector_store %arg6[%c0_27, %c0_28], %170 {strides = array<i32>} : memref<2x32xf32, #tpu.memory_space<vmem>>, vector<2x32xf32>,
    return
  }
}

</mosaic_0001>

<llo_original>
// kernel: lstm_forward.1
$region0: #{lstm_forward.1}
  #allocation0 [shape = 'u32[]', space=smem, size = 0x4, offset = 0x4, fixed_abs, tag = 'smem constant byte address 0x4 - core index']
  #allocation1 [shape = 'u32[144,128]{1,0:T(1,128)}', space=vmem, size = 0x12000, scoped, tag = 'internal scratch']
  %s0 = inlined_call_operand.hbm [shape: f32[16,16], index: 0, kind: input, shape index: {}]
  %s1 = inlined_call_operand.hbm [shape: f32[16,128], index: 1, kind: input, shape index: {}]
  %s2 = inlined_call_operand.hbm [shape: f32[32,128], index: 2, kind: input, shape index: {}]
  %s3 = inlined_call_operand.vmem [shape: f32[1,128], index: 3, kind: input, shape index: {}]
  %s4 = inlined_call_operand.vmem [shape: f32[2,32], index: 4, kind: input, shape index: {}]
  %s5 = inlined_call_operand.vmem [shape: f32[2,32], index: 5, kind: input, shape index: {}]
  %s6 = inlined_call_operand.hbm [shape: f32[2,32], index: 6, kind: output, shape index: {}]
  %s7 = sld [smem:[#allocation0]]
  $region46: #{lstm_forward.1} parent=0
    _
  %s9 = ssub.s32 1, %s7
  %s10 = scalar_select 0, %s9, %s7
  $region1: #{lstm_forward.1} parent=0
    #allocation2 [shape = 'u8[8192]{0}', space=vmem, size = 0x2000, scoped, tag = 'input window, operand 0, single buffered']
    #allocation3 [shape = 's32[1]{0}', space=sflag, size = 0x4, scoped, tag = 'scoped memory for lstm_forward.1']
    #allocation4 [shape = 's32[1]{0}', space=sflag, size = 0x4, scoped, tag = 'scoped memory for lstm_forward.1']
    #allocation5 [shape = 'u8[8192]{0}', space=vmem, size = 0x2000, scoped, tag = 'input window, operand 1, single buffered']
    #allocation6 [shape = 's32[1]{0}', space=sflag, size = 0x4, scoped, tag = 'scoped memory for lstm_forward.1']
    #allocation7 [shape = 'u8[16384]{0}', space=vmem, size = 0x4000, scoped, tag = 'input window, operand 2, single buffered']
    #allocation8 [shape = 'u8[1024]{0}', space=vmem, size = 0x400, scoped, tag = 'output window, operand 0, single buffered']
    %11 = vsyncpa [#allocation3], 0
    %12 = vsyncpa [#allocation6], 0
    %13 = vsyncpa [#allocation4], 0
    // Predicated region
    $region2: #{lstm_forward.1} parent=1 // pred_check
      _
    $region3: #{lstm_forward.1} parent=1 // pred_check_branch
      %15 = sbr.rel (0) target = $region5
    $region4: #{lstm_forward.1} parent=1 // pred_region
      %s17 = ssub.s32 256, 256
      %18 = vsyncadd [#allocation3], %s17
      %s19 = sshll.u32 [#allocation2], 4
      %s20 = int_to_ptr.vmem [resolvable:$true] %s19
      %25 = dma.hbm_to_vmem [thread:$0]  %s0, 256, %s20, [#allocation3], 128, 128, 8
    $region5: #{lstm_forward.1} parent=1 // pred_fallthru
      _
    // Predicated region
    $region6: #{lstm_forward.1} parent=1 // pred_check
      _
    $region7: #{lstm_forward.1} parent=1 // pred_check_branch
      %27 = sbr.rel (0) target = $region9
    $region8: #{lstm_forward.1} parent=1 // pred_region
      %s29 = ssub.s32 256, 256
      %30 = vsyncadd [#allocation6], %s29
      %s31 = sshll.u32 [#allocation5], 4
      %s32 = int_to_ptr.vmem [resolvable:$true] %s31
      %37 = dma.hbm_to_vmem [thread:$0]  %s1, 256, %s32, [#allocation6], 128, 128, 8
    $region9: #{lstm_forward.1} parent=1 // pred_fallthru
      _
    // Predicated region
    $region10: #{lstm_forward.1} parent=1 // pred_check
      _
    $region11: #{lstm_forward.1} parent=1 // pred_check_branch
      %39 = sbr.rel (0) target = $region13
    $region12: #{lstm_forward.1} parent=1 // pred_region
      %s41 = ssub.s32 512, 512
      %42 = vsyncadd [#allocation6], %s41
      %s43 = sshll.u32 [#allocation7], 4
      %s44 = int_to_ptr.vmem [resolvable:$true] %s43
      %49 = dma.hbm_to_vmem [thread:$0]  %s2, 512, %s44, [#allocation6], 128, 128, 8
    $region13: #{lstm_forward.1} parent=1 // pred_fallthru
      _
    // Predicated region
    $region14: #{lstm_forward.1} parent=1 // pred_check
      _
    $region15: #{lstm_forward.1} parent=1 // pred_check_branch
      %51 = sbr.rel (0) target = $region17
    $region16: #{lstm_forward.1} parent=1 // pred_region
      _
    $region17: #{lstm_forward.1} parent=1 // pred_fallthru
      _
    // Predicated region
    $region18: #{lstm_forward.1} parent=1 // pred_check
      _
    $region19: #{lstm_forward.1} parent=1 // pred_check_branch
      %53 = sbr.rel (0) target = $region21
    $region20: #{lstm_forward.1} parent=1 // pred_region
      _
    $region21: #{lstm_forward.1} parent=1 // pred_fallthru
      _
    // Predicated region
    $region22: #{lstm_forward.1} parent=1 // pred_check
      _
    $region23: #{lstm_forward.1} parent=1 // pred_check_branch
      %55 = sbr.rel (0) target = $region25
    $region24: #{lstm_forward.1} parent=1 // pred_region
      _
    $region25: #{lstm_forward.1} parent=1 // pred_fallthru
      _
    // Predicated region
    $region26: #{lstm_forward.1} parent=1 // pred_check
      _
    $region27: #{lstm_forward.1} parent=1 // pred_check_branch
      %57 = sbr.rel (0) target = $region29
    $region28: #{lstm_forward.1} parent=1 // pred_region
      %58 = dma.done [#allocation3], 256
    $region29: #{lstm_forward.1} parent=1 // pred_fallthru
      _
    // Predicated region
    $region30: #{lstm_forward.1} parent=1 // pred_check
      _
    $region31: #{lstm_forward.1} parent=1 // pred_check_branch
      %60 = sbr.rel (0) target = $region33
    $region32: #{lstm_forward.1} parent=1 // pred_region
      %61 = dma.done [#allocation6], 256
    $region33: #{lstm_forward.1} parent=1 // pred_fallthru
      _
    // Predicated region
    $region34: #{lstm_forward.1} parent=1 // pred_check
      _
    $region35: #{lstm_forward.1} parent=1 // pred_check_branch
      %63 = sbr.rel (0) target = $region37
    $region36: #{lstm_forward.1} parent=1 // pred_region
      %64 = dma.done [#allocation6], 512
    $region37: #{lstm_forward.1} parent=1 // pred_fallthru
      _
    %v66 = vld [vmem:[#allocation2] sm:$0xff]
    %v67 = vld [vmem:[#allocation2 + $0x8] sm:$0xff]
    %v68 = vld [vmem:[#allocation5] sm:$0xff]
    %v69 = vld [vmem:[#allocation5 + $0x8] sm:$0xff]
    %v70 = vld [vmem:[%s3] sm:$0x1]
    %v72 = vlaneseq
    %v73 = vshrl.u32 %v72, 7
    %v74 = vsub.s32 0, %v73
    %v75 = vrot.slane %v70, %v74
    %vm77 = vcmask 130048
    %v79 = vsel %vm77, %v66, 0
    %v82 = vsel %vm77, %v67, 0
    %84 = vmatprep.subr.mxu0 0.0
    %85 = vmatpush1.msra.mxu0 0.0
    %86 = vmatprep.subr.mxu0 0.0
    %87 = vmatpush1.msra.mxu0 0.0
    %88 = vmatprep.subr.mxu0 0.0
    %89 = vmatpush1.msra.mxu0 0.0
    %90 = vmatprep.subr.mxu0 0.0
    %91 = vmatpush1.msra.mxu0 0.0
    %92 = vmatprep.subr.mxu0 0.0
    %93 = vmatpush1.msra.mxu0 0.0
    %94 = vmatprep.subr.mxu0 0.0
    %95 = vmatpush1.msra.mxu0 0.0
    %96 = vmatprep.subr.mxu0 0.0
    %97 = vmatpush1.msra.mxu0 0.0
    %98 = vmatprep.subr.mxu0 0.0
    %99 = vmatpush1.msra.mxu0 0.0
    %100 = vmatprep.subr.mxu0 0.0
    %101 = vmatpush1.msra.mxu0 0.0
    %102 = vmatprep.subr.mxu0 0.0
    %103 = vmatpush1.msra.mxu0 0.0
    %104 = vmatprep.subr.mxu0 0.0
    %105 = vmatpush1.msra.mxu0 0.0
    %106 = vmatprep.subr.mxu0 0.0
    %107 = vmatpush1.msra.mxu0 0.0
    %108 = vmatprep.subr.mxu0 0.0
    %109 = vmatpush1.msra.mxu0 0.0
    %110 = vmatprep.subr.mxu0 0.0
    %111 = vmatpush1.msra.mxu0 0.0
    %112 = vmatprep.subr.mxu0 0.0
    %113 = vmatpush1.msra.mxu0 %v69
    %114 = vmatprep.subr.mxu0 0.0
    %115 = vmatpush1.msra.mxu0 %v68
    %116 = vmatprep.subr.mxu0 0.0
    %117 = vmatpush2.msra.mxu0 0.0
    %118 = vmatprep.subr.mxu0 0.0
    %119 = vmatpush2.msra.mxu0 0.0
    %120 = vmatprep.subr.mxu0 0.0
    %121 = vmatpush2.msra.mxu0 0.0
    %122 = vmatprep.subr.mxu0 0.0
    %123 = vmatpush2.msra.mxu0 0.0
    %124 = vmatprep.subr.mxu0 0.0
    %125 = vmatpush2.msra.mxu0 0.0
    %126 = vmatprep.subr.mxu0 0.0
    %127 = vmatpush2.msra.mxu0 0.0
    %128 = vmatprep.subr.mxu0 0.0
    %129 = vmatpush2.msra.mxu0 0.0
    %130 = vmatprep.subr.mxu0 0.0
    %131 = vmatpush2.msra.mxu0 0.0
    %132 = vmatprep.subr.mxu0 0.0
    %133 = vmatpush2.msra.mxu0 0.0
    %134 = vmatprep.subr.mxu0 0.0
    %135 = vmatpush2.msra.mxu0 0.0
    %136 = vmatprep.subr.mxu0 0.0
    %137 = vmatpush2.msra.mxu0 0.0
    %138 = vmatprep.subr.mxu0 0.0
    %139 = vmatpush2.msra.mxu0 0.0
    %140 = vmatprep.subr.mxu0 0.0
    %141 = vmatpush2.msra.mxu0 0.0
    %142 = vmatprep.subr.mxu0 0.0
    %143 = vmatpush2.msra.mxu0 0.0
    %144 = vmatprep.subr.mxu0 0.0
    %145 = vmatpush2.msra.mxu0 0.0
    %146 = vmatprep.subr.mxu0 0.0
    %147 = vmatpush2.msra.mxu0 0.0
    %148 = vmatprep.mubr.f32.mxu0 0.0
    %149 = vmatmul.mubr.f32.gmra.mxu0 %v79
    %v150 = vpop.f32.mrf.mxu0
    %v151 = vadd.f32 %v75, %v150
    %v152 = vpop.f32.mrf.mxu0
    %153 = vmatprep.mubr.f32.mxu0 0.0
    %154 = vmatmul.mubr.f32.gmra.mxu0 %v82
    %v155 = vpop.f32.mrf.mxu0
    %v156 = vadd.f32 %v75, %v155
    %v157 = vpop.f32.mrf.mxu0
    %158 = vdwg.mxu0
    %v159 = vld [vmem:[#allocation7] sm:$0xff]
    %v160 = vld [vmem:[#allocation7 + $0x8] sm:$0xff]
    %v161 = vld [vmem:[#allocation7 + $0x10] sm:$0xff]
    %v162 = vld [vmem:[#allocation7 + $0x18] sm:$0xff]
    %v163 = vpack.c.bf16 %v160, %v159
    %v164 = vpack.c.bf16 %v162, %v161
    %v165 = vld [vmem:[%s4] sm:$0x3]
    %v166 = vld [vmem:[%s5] sm:$0x3]
    %v167 = vpack.c.bf16 %v165, %v165
    %vm168 = vcmask 261120
    %v170 = vsel %vm168, %v167, 0
    %172 = vmatprep.subr.bf16.mxu0 0
    %173 = vmatpush1.bf16.msra.mxu0 0
    %174 = vmatprep.subr.bf16.mxu0 0
    %175 = vmatpush1.bf16.msra.mxu0 0
    %176 = vmatprep.subr.bf16.mxu0 0
    %177 = vmatpush1.bf16.msra.mxu0 0
    %178 = vmatprep.subr.bf16.mxu0 0
    %179 = vmatpush1.bf16.msra.mxu0 0
    %180 = vmatprep.subr.bf16.mxu0 0
    %181 = vmatpush1.bf16.msra.mxu0 0
    %182 = vmatprep.subr.bf16.mxu0 0
    %183 = vmatpush1.bf16.msra.mxu0 0
    %184 = vmatprep.subr.bf16.mxu0 0
    %185 = vmatpush1.bf16.msra.mxu0 %v164
    %186 = vmatprep.subr.bf16.mxu0 0
    %187 = vmatpush1.bf16.msra.mxu0 %v163
    %188 = vmatprep.subr.bf16.mxu0 0
    %189 = vmatpush2.bf16.msra.mxu0 0
    %190 = vmatprep.subr.bf16.mxu0 0
    %191 = vmatpush2.bf16.msra.mxu0 0
    %192 = vmatprep.subr.bf16.mxu0 0
    %193 = vmatpush2.bf16.msra.mxu0 0
    %194 = vmatprep.subr.bf16.mxu0 0
    %195 = vmatpush2.bf16.msra.mxu0 0
    %196 = vmatprep.subr.bf16.mxu0 0
    %197 = vmatpush2.bf16.msra.mxu0 0
    %198 = vmatprep.subr.bf16.mxu0 0
    %199 = vmatpush2.bf16.msra.mxu0 0
    %200 = vmatprep.subr.bf16.mxu0 0
    %201 = vmatpush2.bf16.msra.mxu0 0
    %202 = vmatprep.subr.bf16.mxu0 0
    %203 = vmatpush2.bf16.msra.mxu0 0
    %204 = vmatprep.mubr.bf16.mxu0 0
    %205 = vmatmul.mubr.bf16.gmra.mxu0 %v170
    %v206 = vpop.f32.mrf.mxu0
    %v207 = vadd.f32 0.0, %v206
    %v208 = vpop.f32.mrf.mxu0
    %v209 = vpop.f32.mrf.mxu0
    %v210 = vpop.f32.mrf.mxu0
    %211 = vdwg.mxu0
    %v213 = vrot.slane %v207, 1
    %v216 = vadd.f32 %v151, %v207
    %v217 = vadd.f32 %v156, %v213
    %v218 = vxor.u32 %v216, 2147483648
    %v219 = vxor.u32 %v217, 2147483648
    %v220 = vmul.f32 %v218, 1.442695
    %v221 = vpow.pop %v220
    %v222 = vmul.f32 %v219, 1.442695
    %v223 = vpow.pop %v222
    %v224 = vadd.f32 %v221, 1.0
    %v225 = vadd.f32 %v223, 1.0
    %v226 = vrcp.pop %v224
    %v227 = vmul.f32 1.0, %v226
    %v228 = vrcp.pop %v225
    %v229 = vmul.f32 1.0, %v228
    %v230 = vtanh.pop %v216
    %v231 = vtanh.pop %v217
    %v233 = vrot.slane %v166, 1
    %234 = vrot.lane.b32.xlu0 %v166, 32
    %v235 = vpop.permute.xlu0 %234
    %236 = vrot.lane.b32.xlu0 %v233, 32
    %v237 = vpop.permute.xlu0 %236
    %v240 = vmul.f32 %v227, %v235
    %v241 = vmul.f32 %v229, %v237
    %244 = vrot.lane.b32.xlu0 %v230, 64
    %v245 = vpop.permute.xlu0 %244
    %246 = vrot.lane.b32.xlu0 %v231, 64
    %v247 = vpop.permute.xlu0 %246
    %v250 = vmul.f32 %v227, %v245
    %v251 = vmul.f32 %v229, %v247
    %254 = vrot.lane.b32.xlu0 %v250, 32
    %v255 = vpop.permute.xlu0 %254
    %256 = vrot.lane.b32.xlu0 %v251, 32
    %v257 = vpop.permute.xlu0 %256
    %v260 = vadd.f32 %v240, %v255
    %v261 = vadd.f32 %v241, %v257
    %v262 = vtanh.pop %v260
    %v263 = vtanh.pop %v261
    %266 = vrot.lane.b32.xlu0 %v262, 64
    %v267 = vpop.permute.xlu0 %266
    %268 = vrot.lane.b32.xlu0 %v263, 64
    %v269 = vpop.permute.xlu0 %268
    %v272 = vmul.f32 %v227, %v267
    %v273 = vmul.f32 %v229, %v269
    %v274 = vpack.c.bf16 %v272, %v272
    %v275 = vpack.c.bf16 %v273, %v273
    %v278 = vunpack.c.l.b16 %v274
    %v279 = vunpack.c.l.b16 %v275
    %v280 = vrot.slane %v279, 7
    %vm281 = vcmask 1041409
    %v282 = vsel %vm281, %v280, %v278
    %v283 = vpack.c.b16 %v282, %v282
    %284 = vrot.lane.b32.xlu0 %v283, 32
    %v285 = vpop.permute.xlu0 %284
    %v287 = vsel %vm168, %v285, 0
    %289 = vmatprep.subr.bf16.mxu0 0
    %290 = vmatpush1.bf16.msra.mxu0 0
    %291 = vmatprep.subr.bf16.mxu0 0
    %292 = vmatpush1.bf16.msra.mxu0 0
    %293 = vmatprep.subr.bf16.mxu0 0
    %294 = vmatpush1.bf16.msra.mxu0 0
    %295 = vmatprep.subr.bf16.mxu0 0
    %296 = vmatpush1.bf16.msra.mxu0 0
    %297 = vmatprep.subr.bf16.mxu0 0
    %298 = vmatpush1.bf16.msra.mxu0 0
    %299 = vmatprep.subr.bf16.mxu0 0
    %300 = vmatpush1.bf16.msra.mxu0 0
    %301 = vmatprep.subr.bf16.mxu0 0
    %302 = vmatpush1.bf16.msra.mxu0 %v164
    %303 = vmatprep.subr.bf16.mxu0 0
    %304 = vmatpush1.bf16.msra.mxu0 %v163
    %305 = vmatprep.subr.bf16.mxu0 0
    %306 = vmatpush2.bf16.msra.mxu0 0
    %307 = vmatprep.subr.bf16.mxu0 0
    %308 = vmatpush2.bf16.msra.mxu0 0
    %309 = vmatprep.subr.bf16.mxu0 0
    %310 = vmatpush2.bf16.msra.mxu0 0
    %311 = vmatprep.subr.bf16.mxu0 0
    %312 = vmatpush2.bf16.msra.mxu0 0
    %313 = vmatprep.subr.bf16.mxu0 0
    %314 = vmatpush2.bf16.msra.mxu0 0
    %315 = vmatprep.subr.bf16.mxu0 0
    %316 = vmatpush2.bf16.msra.mxu0 0
    %317 = vmatprep.subr.bf16.mxu0 0
    %318 = vmatpush2.bf16.msra.mxu0 0
    %319 = vmatprep.subr.bf16.mxu0 0
    %320 = vmatpush2.bf16.msra.mxu0 0
    %321 = vmatprep.mubr.bf16.mxu0 0
    %322 = vmatmul.mubr.bf16.gmra.mxu0 %v287
    %v323 = vpop.f32.mrf.mxu0
    %v324 = vadd.f32 0.0, %v323
    %v325 = vpop.f32.mrf.mxu0
    %v326 = vpop.f32.mrf.mxu0
    %v327 = vpop.f32.mrf.mxu0
    %328 = vdwg.mxu0
    %v330 = vrot.slane %v324, 7
    %v333 = vadd.f32 %v151, %v330
    %v334 = vadd.f32 %v156, %v324
    %v335 = vxor.u32 %v333, 2147483648
    %v336 = vxor.u32 %v334, 2147483648
    %v337 = vmul.f32 %v335, 1.442695
    %v338 = vpow.pop %v337
    %v339 = vmul.f32 %v336, 1.442695
    %v340 = vpow.pop %v339
    %v341 = vadd.f32 %v338, 1.0
    %v342 = vadd.f32 %v340, 1.0
    %v343 = vrcp.pop %v341
    %v344 = vmul.f32 1.0, %v343
    %v345 = vrcp.pop %v342
    %v346 = vmul.f32 1.0, %v345
    %v347 = vtanh.pop %v333
    %v348 = vtanh.pop %v334
    %v351 = vrot.slane %v260, 7
    %v352 = vrot.slane %v261, 7
    %v355 = vmul.f32 %v344, %v351
    %v356 = vmul.f32 %v346, %v352
    %359 = vrot.lane.b32.xlu0 %v347, 64
    %v360 = vpop.permute.xlu0 %359
    %361 = vrot.lane.b32.xlu0 %v348, 64
    %v362 = vpop.permute.xlu0 %361
    %v365 = vmul.f32 %v344, %v360
    %v366 = vmul.f32 %v346, %v362
    %369 = vrot.lane.b32.xlu0 %v365, 32
    %v370 = vpop.permute.xlu0 %369
    %371 = vrot.lane.b32.xlu0 %v366, 32
    %v372 = vpop.permute.xlu0 %371
    %v375 = vadd.f32 %v355, %v370
    %v376 = vadd.f32 %v356, %v372
    %v377 = vtanh.pop %v375
    %v378 = vtanh.pop %v376
    %381 = vrot.lane.b32.xlu0 %v377, 64
    %v382 = vpop.permute.xlu0 %381
    %383 = vrot.lane.b32.xlu0 %v378, 64
    %v384 = vpop.permute.xlu0 %383
    %v387 = vmul.f32 %v344, %v382
    %v388 = vmul.f32 %v346, %v384
    %v389 = vpack.c.bf16 %v387, %v387
    %v390 = vpack.c.bf16 %v388, %v388
    %v393 = vunpack.c.l.b16 %v389
    %v394 = vunpack.c.l.b16 %v390
    %v395 = vrot.slane %v393, 1
    %v396 = vsel %vm281, %v394, %v395
    %v397 = vpack.c.b16 %v396, %v396
    %398 = vrot.lane.b32.xlu0 %v397, 32
    %v399 = vpop.permute.xlu0 %398
    %v401 = vsel %vm168, %v399, 0
    %403 = vmatprep.subr.bf16.mxu0 0
    %404 = vmatpush1.bf16.msra.mxu0 0
    %405 = vmatprep.subr.bf16.mxu0 0
    %406 = vmatpush1.bf16.msra.mxu0 0
    %407 = vmatprep.subr.bf16.mxu0 0
    %408 = vmatpush1.bf16.msra.mxu0 0
    %409 = vmatprep.subr.bf16.mxu0 0
    %410 = vmatpush1.bf16.msra.mxu0 0
    %411 = vmatprep.subr.bf16.mxu0 0
    %412 = vmatpush1.bf16.msra.mxu0 0
    %413 = vmatprep.subr.bf16.mxu0 0
    %414 = vmatpush1.bf16.msra.mxu0 0
    %415 = vmatprep.subr.bf16.mxu0 0
    %416 = vmatpush1.bf16.msra.mxu0 %v164
    %417 = vmatprep.subr.bf16.mxu0 0
    %418 = vmatpush1.bf16.msra.mxu0 %v163
    %419 = vmatprep.subr.bf16.mxu0 0
    %420 = vmatpush2.bf16.msra.mxu0 0
    %421 = vmatprep.subr.bf16.mxu0 0
    %422 = vmatpush2.bf16.msra.mxu0 0
    %423 = vmatprep.subr.bf16.mxu0 0
    %424 = vmatpush2.bf16.msra.mxu0 0
    %425 = vmatprep.subr.bf16.mxu0 0
    %426 = vmatpush2.bf16.msra.mxu0 0
    %427 = vmatprep.subr.bf16.mxu0 0
    %428 = vmatpush2.bf16.msra.mxu0 0
    %429 = vmatprep.subr.bf16.mxu0 0
    %430 = vmatpush2.bf16.msra.mxu0 0
    %431 = vmatprep.subr.bf16.mxu0 0
    %432 = vmatpush2.bf16.msra.mxu0 0
    %433 = vmatprep.subr.bf16.mxu0 0
    %434 = vmatpush2.bf16.msra.mxu0 0
    %435 = vmatprep.mubr.bf16.mxu0 0
    %436 = vmatmul.mubr.bf16.gmra.mxu0 %v401
    %v437 = vpop.f32.mrf.mxu0
    %v438 = vadd.f32 0.0, %v437
    %v439 = vpop.f32.mrf.mxu0
    %v440 = vpop.f32.mrf.mxu0
    %v441 = vpop.f32.mrf.mxu0
    %442 = vdwg.mxu0
    %v444 = vrot.slane %v438, 6
    %v445 = vrot.slane %v438, 7
    %v448 = vadd.f32 %v151, %v444
    %v449 = vadd.f32 %v156, %v445
    %v450 = vxor.u32 %v448, 2147483648
    %v451 = vxor.u32 %v449, 2147483648
    %v452 = vmul.f32 %v450, 1.442695
    %v453 = vpow.pop %v452
    %v454 = vmul.f32 %v451, 1.442695
    %v455 = vpow.pop %v454
    %v456 = vadd.f32 %v453, 1.0
    %v457 = vadd.f32 %v455, 1.0
    %v458 = vrcp.pop %v456
    %v459 = vmul.f32 1.0, %v458
    %v460 = vrcp.pop %v457
    %v461 = vmul.f32 1.0, %v460
    %v462 = vtanh.pop %v448
    %v463 = vtanh.pop %v449
    %v466 = vrot.slane %v375, 7
    %v467 = vrot.slane %v376, 7
    %v470 = vmul.f32 %v459, %v466
    %v471 = vmul.f32 %v461, %v467
    %474 = vrot.lane.b32.xlu0 %v462, 64
    %v475 = vpop.permute.xlu0 %474
    %476 = vrot.lane.b32.xlu0 %v463, 64
    %v477 = vpop.permute.xlu0 %476
    %v480 = vmul.f32 %v459, %v475
    %v481 = vmul.f32 %v461, %v477
    %484 = vrot.lane.b32.xlu0 %v480, 32
    %v485 = vpop.permute.xlu0 %484
    %486 = vrot.lane.b32.xlu0 %v481, 32
    %v487 = vpop.permute.xlu0 %486
    %v490 = vadd.f32 %v470, %v485
    %v491 = vadd.f32 %v471, %v487
    %v492 = vtanh.pop %v490
    %v493 = vtanh.pop %v491
    %496 = vrot.lane.b32.xlu0 %v492, 64
    %v497 = vpop.permute.xlu0 %496
    %498 = vrot.lane.b32.xlu0 %v493, 64
    %v499 = vpop.permute.xlu0 %498
    %v502 = vmul.f32 %v459, %v497
    %v503 = vmul.f32 %v461, %v499
    %v504 = vpack.c.bf16 %v502, %v502
    %v505 = vpack.c.bf16 %v503, %v503
    %v508 = vunpack.c.l.b16 %v504
    %v509 = vunpack.c.l.b16 %v505
    %v510 = vrot.slane %v508, 2
    %v511 = vrot.slane %v509, 1
    %v512 = vsel %vm281, %v511, %v510
    %v513 = vpack.c.b16 %v512, %v512
    %514 = vrot.lane.b32.xlu0 %v513, 32
    %v515 = vpop.permute.xlu0 %514
    %v517 = vsel %vm168, %v515, 0
    %519 = vmatprep.subr.bf16.mxu0 0
    %520 = vmatpush1.bf16.msra.mxu0 0
    %521 = vmatprep.subr.bf16.mxu0 0
    %522 = vmatpush1.bf16.msra.mxu0 0
    %523 = vmatprep.subr.bf16.mxu0 0
    %524 = vmatpush1.bf16.msra.mxu0 0
    %525 = vmatprep.subr.bf16.mxu0 0
    %526 = vmatpush1.bf16.msra.mxu0 0
    %527 = vmatprep.subr.bf16.mxu0 0
    %528 = vmatpush1.bf16.msra.mxu0 0
    %529 = vmatprep.subr.bf16.mxu0 0
    %530 = vmatpush1.bf16.msra.mxu0 0
    %531 = vmatprep.subr.bf16.mxu0 0
    %532 = vmatpush1.bf16.msra.mxu0 %v164
    %533 = vmatprep.subr.bf16.mxu0 0
    %534 = vmatpush1.bf16.msra.mxu0 %v163
    %535 = vmatprep.subr.bf16.mxu0 0
    %536 = vmatpush2.bf16.msra.mxu0 0
    %537 = vmatprep.subr.bf16.mxu0 0
    %538 = vmatpush2.bf16.msra.mxu0 0
    %539 = vmatprep.subr.bf16.mxu0 0
    %540 = vmatpush2.bf16.msra.mxu0 0
    %541 = vmatprep.subr.bf16.mxu0 0
    %542 = vmatpush2.bf16.msra.mxu0 0
    %543 = vmatprep.subr.bf16.mxu0 0
    %544 = vmatpush2.bf16.msra.mxu0 0
    %545 = vmatprep.subr.bf16.mxu0 0
    %546 = vmatpush2.bf16.msra.mxu0 0
    %547 = vmatprep.subr.bf16.mxu0 0
    %548 = vmatpush2.bf16.msra.mxu0 0
    %549 = vmatprep.subr.bf16.mxu0 0
    %550 = vmatpush2.bf16.msra.mxu0 0
    %551 = vmatprep.mubr.bf16.mxu0 0
    %552 = vmatmul.mubr.bf16.gmra.mxu0 %v517
    %v553 = vpop.f32.mrf.mxu0
    %v554 = vadd.f32 0.0, %v553
    %v555 = vpop.f32.mrf.mxu0
    %v556 = vpop.f32.mrf.mxu0
    %v557 = vpop.f32.mrf.mxu0
    %558 = vdwg.mxu0
    %v560 = vrot.slane %v554, 5
    %v561 = vrot.slane %v554, 6
    %v564 = vadd.f32 %v151, %v560
    %v565 = vadd.f32 %v156, %v561
    %v566 = vxor.u32 %v564, 2147483648
    %v567 = vxor.u32 %v565, 2147483648
    %v568 = vmul.f32 %v566, 1.442695
    %v569 = vpow.pop %v568
    %v570 = vmul.f32 %v567, 1.442695
    %v571 = vpow.pop %v570
    %v572 = vadd.f32 %v569, 1.0
    %v573 = vadd.f32 %v571, 1.0
    %v574 = vrcp.pop %v572
    %v575 = vmul.f32 1.0, %v574
    %v576 = vrcp.pop %v573
    %v577 = vmul.f32 1.0, %v576
    %v578 = vtanh.pop %v564
    %v579 = vtanh.pop %v565
    %v582 = vrot.slane %v490, 7
    %v583 = vrot.slane %v491, 7
    %v586 = vmul.f32 %v575, %v582
    %v587 = vmul.f32 %v577, %v583
    %590 = vrot.lane.b32.xlu0 %v578, 64
    %v591 = vpop.permute.xlu0 %590
    %592 = vrot.lane.b32.xlu0 %v579, 64
    %v593 = vpop.permute.xlu0 %592
    %v596 = vmul.f32 %v575, %v591
    %v597 = vmul.f32 %v577, %v593
    %600 = vrot.lane.b32.xlu0 %v596, 32
    %v601 = vpop.permute.xlu0 %600
    %602 = vrot.lane.b32.xlu0 %v597, 32
    %v603 = vpop.permute.xlu0 %602
    %v606 = vadd.f32 %v586, %v601
    %v607 = vadd.f32 %v587, %v603
    %v608 = vtanh.pop %v606
    %v609 = vtanh.pop %v607
    %612 = vrot.lane.b32.xlu0 %v608, 64
    %v613 = vpop.permute.xlu0 %612
    %614 = vrot.lane.b32.xlu0 %v609, 64
    %v615 = vpop.permute.xlu0 %614
    %v618 = vmul.f32 %v575, %v613
    %v619 = vmul.f32 %v577, %v615
    %v620 = vpack.c.bf16 %v618, %v618
    %v621 = vpack.c.bf16 %v619, %v619
    %v624 = vunpack.c.l.b16 %v620
    %v625 = vunpack.c.l.b16 %v621
    %v626 = vrot.slane %v624, 3
    %v627 = vrot.slane %v625, 2
    %v628 = vsel %vm281, %v627, %v626
    %v629 = vpack.c.b16 %v628, %v628
    %630 = vrot.lane.b32.xlu0 %v629, 32
    %v631 = vpop.permute.xlu0 %630
    %v633 = vsel %vm168, %v631, 0
    %635 = vmatprep.subr.bf16.mxu0 0
    %636 = vmatpush1.bf16.msra.mxu0 0
    %637 = vmatprep.subr.bf16.mxu0 0
    %638 = vmatpush1.bf16.msra.mxu0 0
    %639 = vmatprep.subr.bf16.mxu0 0
    %640 = vmatpush1.bf16.msra.mxu0 0
    %641 = vmatprep.subr.bf16.mxu0 0
    %642 = vmatpush1.bf16.msra.mxu0 0
    %643 = vmatprep.subr.bf16.mxu0 0
    %644 = vmatpush1.bf16.msra.mxu0 0
    %645 = vmatprep.subr.bf16.mxu0 0
    %646 = vmatpush1.bf16.msra.mxu0 0
    %647 = vmatprep.subr.bf16.mxu0 0
    %648 = vmatpush1.bf16.msra.mxu0 %v164
    %649 = vmatprep.subr.bf16.mxu0 0
    %650 = vmatpush1.bf16.msra.mxu0 %v163
    %651 = vmatprep.subr.bf16.mxu0 0
    %652 = vmatpush2.bf16.msra.mxu0 0
    %653 = vmatprep.subr.bf16.mxu0 0
    %654 = vmatpush2.bf16.msra.mxu0 0
    %655 = vmatprep.subr.bf16.mxu0 0
    %656 = vmatpush2.bf16.msra.mxu0 0
    %657 = vmatprep.subr.bf16.mxu0 0
    %658 = vmatpush2.bf16.msra.mxu0 0
    %659 = vmatprep.subr.bf16.mxu0 0
    %660 = vmatpush2.bf16.msra.mxu0 0
    %661 = vmatprep.subr.bf16.mxu0 0
    %662 = vmatpush2.bf16.msra.mxu0 0
    %663 = vmatprep.subr.bf16.mxu0 0
    %664 = vmatpush2.bf16.msra.mxu0 0
    %665 = vmatprep.subr.bf16.mxu0 0
    %666 = vmatpush2.bf16.msra.mxu0 0
    %667 = vmatprep.mubr.bf16.mxu0 0
    %668 = vmatmul.mubr.bf16.gmra.mxu0 %v633
    %v669 = vpop.f32.mrf.mxu0
    %v670 = vadd.f32 0.0, %v669
    %v671 = vpop.f32.mrf.mxu0
    %v672 = vpop.f32.mrf.mxu0
    %v673 = vpop.f32.mrf.mxu0
    %674 = vdwg.mxu0
    %v676 = vrot.slane %v670, 4
    %v677 = vrot.slane %v670, 5
    %v680 = vadd.f32 %v151, %v676
    %v681 = vadd.f32 %v156, %v677
    %v682 = vxor.u32 %v680, 2147483648
    %v683 = vxor.u32 %v681, 2147483648
    %v684 = vmul.f32 %v682, 1.442695
    %v685 = vpow.pop %v684
    %v686 = vmul.f32 %v683, 1.442695
    %v687 = vpow.pop %v686
    %v688 = vadd.f32 %v685, 1.0
    %v689 = vadd.f32 %v687, 1.0
    %v690 = vrcp.pop %v688
    %v691 = vmul.f32 1.0, %v690
    %v692 = vrcp.pop %v689
    %v693 = vmul.f32 1.0, %v692
    %v694 = vtanh.pop %v680
    %v695 = vtanh.pop %v681
    %v698 = vrot.slane %v606, 7
    %v699 = vrot.slane %v607, 7
    %v702 = vmul.f32 %v691, %v698
    %v703 = vmul.f32 %v693, %v699
    %706 = vrot.lane.b32.xlu0 %v694, 64
    %v707 = vpop.permute.xlu0 %706
    %708 = vrot.lane.b32.xlu0 %v695, 64
    %v709 = vpop.permute.xlu0 %708
    %v712 = vmul.f32 %v691, %v707
    %v713 = vmul.f32 %v693, %v709
    %716 = vrot.lane.b32.xlu0 %v712, 32
    %v717 = vpop.permute.xlu0 %716
    %718 = vrot.lane.b32.xlu0 %v713, 32
    %v719 = vpop.permute.xlu0 %718
    %v722 = vadd.f32 %v702, %v717
    %v723 = vadd.f32 %v703, %v719
    %v724 = vtanh.pop %v722
    %v725 = vtanh.pop %v723
    %728 = vrot.lane.b32.xlu0 %v724, 64
    %v729 = vpop.permute.xlu0 %728
    %730 = vrot.lane.b32.xlu0 %v725, 64
    %v731 = vpop.permute.xlu0 %730
    %v734 = vmul.f32 %v691, %v729
    %v735 = vmul.f32 %v693, %v731
    %v736 = vpack.c.bf16 %v734, %v734
    %v737 = vpack.c.bf16 %v735, %v735
    %v740 = vunpack.c.l.b16 %v736
    %v741 = vunpack.c.l.b16 %v737
    %v742 = vrot.slane %v740, 4
    %v743 = vrot.slane %v741, 3
    %v744 = vsel %vm281, %v743, %v742
    %v745 = vpack.c.b16 %v744, %v744
    %746 = vrot.lane.b32.xlu0 %v745, 32
    %v747 = vpop.permute.xlu0 %746
    %v749 = vsel %vm168, %v747, 0
    %751 = vmatprep.subr.bf16.mxu0 0
    %752 = vmatpush1.bf16.msra.mxu0 0
    %753 = vmatprep.subr.bf16.mxu0 0
    %754 = vmatpush1.bf16.msra.mxu0 0
    %755 = vmatprep.subr.bf16.mxu0 0
    %756 = vmatpush1.bf16.msra.mxu0 0
    %757 = vmatprep.subr.bf16.mxu0 0
    %758 = vmatpush1.bf16.msra.mxu0 0
    %759 = vmatprep.subr.bf16.mxu0 0
    %760 = vmatpush1.bf16.msra.mxu0 0
    %761 = vmatprep.subr.bf16.mxu0 0
    %762 = vmatpush1.bf16.msra.mxu0 0
    %763 = vmatprep.subr.bf16.mxu0 0
    %764 = vmatpush1.bf16.msra.mxu0 %v164
    %765 = vmatprep.subr.bf16.mxu0 0
    %766 = vmatpush1.bf16.msra.mxu0 %v163
    %767 = vmatprep.subr.bf16.mxu0 0
    %768 = vmatpush2.bf16.msra.mxu0 0
    %769 = vmatprep.subr.bf16.mxu0 0
    %770 = vmatpush2.bf16.msra.mxu0 0
    %771 = vmatprep.subr.bf16.mxu0 0
    %772 = vmatpush2.bf16.msra.mxu0 0
    %773 = vmatprep.subr.bf16.mxu0 0
    %774 = vmatpush2.bf16.msra.mxu0 0
    %775 = vmatprep.subr.bf16.mxu0 0
    %776 = vmatpush2.bf16.msra.mxu0 0
    %777 = vmatprep.subr.bf16.mxu0 0
    %778 = vmatpush2.bf16.msra.mxu0 0
    %779 = vmatprep.subr.bf16.mxu0 0
    %780 = vmatpush2.bf16.msra.mxu0 0
    %781 = vmatprep.subr.bf16.mxu0 0
    %782 = vmatpush2.bf16.msra.mxu0 0
    %783 = vmatprep.mubr.bf16.mxu0 0
    %784 = vmatmul.mubr.bf16.gmra.mxu0 %v749
    %v785 = vpop.f32.mrf.mxu0
    %v786 = vadd.f32 0.0, %v785
    %v787 = vpop.f32.mrf.mxu0
    %v788 = vpop.f32.mrf.mxu0
    %v789 = vpop.f32.mrf.mxu0
    %790 = vdwg.mxu0
    %v792 = vrot.slane %v786, 3
    %v793 = vrot.slane %v786, 4
    %v796 = vadd.f32 %v151, %v792
    %v797 = vadd.f32 %v156, %v793
    %v798 = vxor.u32 %v796, 2147483648
    %v799 = vxor.u32 %v797, 2147483648
    %v800 = vmul.f32 %v798, 1.442695
    %v801 = vpow.pop %v800
    %v802 = vmul.f32 %v799, 1.442695
    %v803 = vpow.pop %v802
    %v804 = vadd.f32 %v801, 1.0
    %v805 = vadd.f32 %v803, 1.0
    %v806 = vrcp.pop %v804
    %v807 = vmul.f32 1.0, %v806
    %v808 = vrcp.pop %v805
    %v809 = vmul.f32 1.0, %v808
    %v810 = vtanh.pop %v796
    %v811 = vtanh.pop %v797
    %v814 = vrot.slane %v722, 7
    %v815 = vrot.slane %v723, 7
    %v818 = vmul.f32 %v807, %v814
    %v819 = vmul.f32 %v809, %v815
    %822 = vrot.lane.b32.xlu0 %v810, 64
    %v823 = vpop.permute.xlu0 %822
    %824 = vrot.lane.b32.xlu0 %v811, 64
    %v825 = vpop.permute.xlu0 %824
    %v828 = vmul.f32 %v807, %v823
    %v829 = vmul.f32 %v809, %v825
    %832 = vrot.lane.b32.xlu0 %v828, 32
    %v833 = vpop.permute.xlu0 %832
    %834 = vrot.lane.b32.xlu0 %v829, 32
    %v835 = vpop.permute.xlu0 %834
    %v838 = vadd.f32 %v818, %v833
    %v839 = vadd.f32 %v819, %v835
    %v840 = vtanh.pop %v838
    %v841 = vtanh.pop %v839
    %844 = vrot.lane.b32.xlu0 %v840, 64
    %v845 = vpop.permute.xlu0 %844
    %846 = vrot.lane.b32.xlu0 %v841, 64
    %v847 = vpop.permute.xlu0 %846
    %v850 = vmul.f32 %v807, %v845
    %v851 = vmul.f32 %v809, %v847
    %v852 = vpack.c.bf16 %v850, %v850
    %v853 = vpack.c.bf16 %v851, %v851
    %v856 = vunpack.c.l.b16 %v852
    %v857 = vunpack.c.l.b16 %v853
    %v858 = vrot.slane %v856, 5
    %v859 = vrot.slane %v857, 4
    %v860 = vsel %vm281, %v859, %v858
    %v861 = vpack.c.b16 %v860, %v860
    %862 = vrot.lane.b32.xlu0 %v861, 32
    %v863 = vpop.permute.xlu0 %862
    %v865 = vsel %vm168, %v863, 0
    %867 = vmatprep.subr.bf16.mxu0 0
    %868 = vmatpush1.bf16.msra.mxu0 0
    %869 = vmatprep.subr.bf16.mxu0 0
    %870 = vmatpush1.bf16.msra.mxu0 0
    %871 = vmatprep.subr.bf16.mxu0 0
    %872 = vmatpush1.bf16.msra.mxu0 0
    %873 = vmatprep.subr.bf16.mxu0 0
    %874 = vmatpush1.bf16.msra.mxu0 0
    %875 = vmatprep.subr.bf16.mxu0 0
    %876 = vmatpush1.bf16.msra.mxu0 0
    %877 = vmatprep.subr.bf16.mxu0 0
    %878 = vmatpush1.bf16.msra.mxu0 0
    %879 = vmatprep.subr.bf16.mxu0 0
    %880 = vmatpush1.bf16.msra.mxu0 %v164
    %881 = vmatprep.subr.bf16.mxu0 0
    %882 = vmatpush1.bf16.msra.mxu0 %v163
    %883 = vmatprep.subr.bf16.mxu0 0
    %884 = vmatpush2.bf16.msra.mxu0 0
    %885 = vmatprep.subr.bf16.mxu0 0
    %886 = vmatpush2.bf16.msra.mxu0 0
    %887 = vmatprep.subr.bf16.mxu0 0
    %888 = vmatpush2.bf16.msra.mxu0 0
    %889 = vmatprep.subr.bf16.mxu0 0
    %890 = vmatpush2.bf16.msra.mxu0 0
    %891 = vmatprep.subr.bf16.mxu0 0
    %892 = vmatpush2.bf16.msra.mxu0 0
    %893 = vmatprep.subr.bf16.mxu0 0
    %894 = vmatpush2.bf16.msra.mxu0 0
    %895 = vmatprep.subr.bf16.mxu0 0
    %896 = vmatpush2.bf16.msra.mxu0 0
    %897 = vmatprep.subr.bf16.mxu0 0
    %898 = vmatpush2.bf16.msra.mxu0 0
    %899 = vmatprep.mubr.bf16.mxu0 0
    %900 = vmatmul.mubr.bf16.gmra.mxu0 %v865
    %v901 = vpop.f32.mrf.mxu0
    %v902 = vadd.f32 0.0, %v901
    %v903 = vpop.f32.mrf.mxu0
    %v904 = vpop.f32.mrf.mxu0
    %v905 = vpop.f32.mrf.mxu0
    %906 = vdwg.mxu0
    %v908 = vrot.slane %v902, 2
    %v909 = vrot.slane %v902, 3
    %v912 = vadd.f32 %v151, %v908
    %v913 = vadd.f32 %v156, %v909
    %v914 = vxor.u32 %v912, 2147483648
    %v915 = vxor.u32 %v913, 2147483648
    %v916 = vmul.f32 %v914, 1.442695
    %v917 = vpow.pop %v916
    %v918 = vmul.f32 %v915, 1.442695
    %v919 = vpow.pop %v918
    %v920 = vadd.f32 %v917, 1.0
    %v921 = vadd.f32 %v919, 1.0
    %v922 = vrcp.pop %v920
    %v923 = vmul.f32 1.0, %v922
    %v924 = vrcp.pop %v921
    %v925 = vmul.f32 1.0, %v924
    %v926 = vtanh.pop %v912
    %v927 = vtanh.pop %v913
    %v930 = vrot.slane %v838, 7
    %v931 = vrot.slane %v839, 7
    %v934 = vmul.f32 %v923, %v930
    %v935 = vmul.f32 %v925, %v931
    %938 = vrot.lane.b32.xlu0 %v926, 64
    %v939 = vpop.permute.xlu0 %938
    %940 = vrot.lane.b32.xlu0 %v927, 64
    %v941 = vpop.permute.xlu0 %940
    %v944 = vmul.f32 %v923, %v939
    %v945 = vmul.f32 %v925, %v941
    %948 = vrot.lane.b32.xlu0 %v944, 32
    %v949 = vpop.permute.xlu0 %948
    %950 = vrot.lane.b32.xlu0 %v945, 32
    %v951 = vpop.permute.xlu0 %950
    %v954 = vadd.f32 %v934, %v949
    %v955 = vadd.f32 %v935, %v951
    %v956 = vtanh.pop %v954
    %v957 = vtanh.pop %v955
    %960 = vrot.lane.b32.xlu0 %v956, 64
    %v961 = vpop.permute.xlu0 %960
    %962 = vrot.lane.b32.xlu0 %v957, 64
    %v963 = vpop.permute.xlu0 %962
    %v966 = vmul.f32 %v923, %v961
    %v967 = vmul.f32 %v925, %v963
    %v968 = vpack.c.bf16 %v966, %v966
    %v969 = vpack.c.bf16 %v967, %v967
    %v972 = vunpack.c.l.b16 %v968
    %v973 = vunpack.c.l.b16 %v969
    %v974 = vrot.slane %v972, 6
    %v975 = vrot.slane %v973, 5
    %v976 = vsel %vm281, %v975, %v974
    %v977 = vpack.c.b16 %v976, %v976
    %978 = vrot.lane.b32.xlu0 %v977, 32
    %v979 = vpop.permute.xlu0 %978
    %v981 = vsel %vm168, %v979, 0
    %983 = vmatprep.subr.bf16.mxu0 0
    %984 = vmatpush1.bf16.msra.mxu0 0
    %985 = vmatprep.subr.bf16.mxu0 0
    %986 = vmatpush1.bf16.msra.mxu0 0
    %987 = vmatprep.subr.bf16.mxu0 0
    %988 = vmatpush1.bf16.msra.mxu0 0
    %989 = vmatprep.subr.bf16.mxu0 0
    %990 = vmatpush1.bf16.msra.mxu0 0
    %991 = vmatprep.subr.bf16.mxu0 0
    %992 = vmatpush1.bf16.msra.mxu0 0
    %993 = vmatprep.subr.bf16.mxu0 0
    %994 = vmatpush1.bf16.msra.mxu0 0
    %995 = vmatprep.subr.bf16.mxu0 0
    %996 = vmatpush1.bf16.msra.mxu0 %v164
    %997 = vmatprep.subr.bf16.mxu0 0
    %998 = vmatpush1.bf16.msra.mxu0 %v163
    %999 = vmatprep.subr.bf16.mxu0 0
    %1000 = vmatpush2.bf16.msra.mxu0 0
    %1001 = vmatprep.subr.bf16.mxu0 0
    %1002 = vmatpush2.bf16.msra.mxu0 0
    %1003 = vmatprep.subr.bf16.mxu0 0
    %1004 = vmatpush2.bf16.msra.mxu0 0
    %1005 = vmatprep.subr.bf16.mxu0 0
    %1006 = vmatpush2.bf16.msra.mxu0 0
    %1007 = vmatprep.subr.bf16.mxu0 0
    %1008 = vmatpush2.bf16.msra.mxu0 0
    %1009 = vmatprep.subr.bf16.mxu0 0
    %1010 = vmatpush2.bf16.msra.mxu0 0
    %1011 = vmatprep.subr.bf16.mxu0 0
    %1012 = vmatpush2.bf16.msra.mxu0 0
    %1013 = vmatprep.subr.bf16.mxu0 0
    %1014 = vmatpush2.bf16.msra.mxu0 0
    %1015 = vmatprep.mubr.bf16.mxu0 0
    %1016 = vmatmul.mubr.bf16.gmra.mxu0 %v981
    %v1017 = vpop.f32.mrf.mxu0
    %v1018 = vadd.f32 0.0, %v1017
    %v1019 = vpop.f32.mrf.mxu0
    %v1020 = vpop.f32.mrf.mxu0
    %v1021 = vpop.f32.mrf.mxu0
    %1022 = vdwg.mxu0
    %v1024 = vrot.slane %v1018, 1
    %v1025 = vrot.slane %v1018, 2
    %v1028 = vadd.f32 %v151, %v1024
    %v1029 = vadd.f32 %v156, %v1025
    %v1030 = vxor.u32 %v1028, 2147483648
    %v1031 = vxor.u32 %v1029, 2147483648
    %v1032 = vmul.f32 %v1030, 1.442695
    %v1033 = vpow.pop %v1032
    %v1034 = vmul.f32 %v1031, 1.442695
    %v1035 = vpow.pop %v1034
    %v1036 = vadd.f32 %v1033, 1.0
    %v1037 = vadd.f32 %v1035, 1.0
    %v1038 = vrcp.pop %v1036
    %v1039 = vmul.f32 1.0, %v1038
    %v1040 = vrcp.pop %v1037
    %v1041 = vmul.f32 1.0, %v1040
    %v1042 = vtanh.pop %v1028
    %v1043 = vtanh.pop %v1029
    %v1046 = vrot.slane %v954, 7
    %v1047 = vrot.slane %v955, 7
    %v1050 = vmul.f32 %v1039, %v1046
    %v1051 = vmul.f32 %v1041, %v1047
    %1054 = vrot.lane.b32.xlu0 %v1042, 64
    %v1055 = vpop.permute.xlu0 %1054
    %1056 = vrot.lane.b32.xlu0 %v1043, 64
    %v1057 = vpop.permute.xlu0 %1056
    %v1060 = vmul.f32 %v1039, %v1055
    %v1061 = vmul.f32 %v1041, %v1057
    %1064 = vrot.lane.b32.xlu0 %v1060, 32
    %v1065 = vpop.permute.xlu0 %1064
    %1066 = vrot.lane.b32.xlu0 %v1061, 32
    %v1067 = vpop.permute.xlu0 %1066
    %v1070 = vadd.f32 %v1050, %v1065
    %v1071 = vadd.f32 %v1051, %v1067
    %v1072 = vtanh.pop %v1070
    %v1073 = vtanh.pop %v1071
    %1076 = vrot.lane.b32.xlu0 %v1072, 64
    %v1077 = vpop.permute.xlu0 %1076
    %1078 = vrot.lane.b32.xlu0 %v1073, 64
    %v1079 = vpop.permute.xlu0 %1078
    %v1082 = vmul.f32 %v1039, %v1077
    %v1083 = vmul.f32 %v1041, %v1079
    %v1086 = vrot.slane %v1083, 7
    %1087 = vrot.lane.b32.xlu0 %v1082, 32
    %v1088 = vpop.permute.xlu0 %1087
    %1089 = vrot.lane.b32.xlu0 %v1086, 32
    %v1090 = vpop.permute.xlu0 %1089
    %vm1093 = vcmask 261127
    %1094 = vst.msk [vmem:[#allocation8 - $0x7] sm:$0x80] %vm1093, %v1088
    %vm1095 = vcmask 253952
    %1096 = vst.msk [vmem:[#allocation8 + $0x1] sm:$0x1] %vm1095, %v1090
    // Predicated region
    $region38: #{lstm_forward.1} parent=1 // pred_check
      _
    $region39: #{lstm_forward.1} parent=1 // pred_check_branch
      %1098 = sbr.rel (0) target = $region41
    $region40: #{lstm_forward.1} parent=1 // pred_region
      %s1100 = ssub.s32 32, 32
      %1101 = vsyncadd [#allocation4], %s1100
      %s1103 = sshll.u32 [#allocation8], 4
      %s1104 = int_to_ptr.vmem [resolvable:$true] %s1103
      %1106 = dma.vmem_to_hbm [thread:$0]  %s1104, 32, %s6, [#allocation4]
    $region41: #{lstm_forward.1} parent=1 // pred_fallthru
      _
    // Predicated region
    $region42: #{lstm_forward.1} parent=1 // pred_check
      _
    $region43: #{lstm_forward.1} parent=1 // pred_check_branch
      %1108 = sbr.rel (0) target = $region45
    $region44: #{lstm_forward.1} parent=1 // pred_region
      %1109 = dma.done [#allocation4], 32
    $region45: #{lstm_forward.1} parent=1 // pred_fallthru
      _
    %1110 = vsyncpa [#allocation3], 1
    %1111 = vsyncpa [#allocation6], 1
    %1112 = vsyncpa [#allocation4], 1

</llo_original>
